<compile_context>
chip_gen: v6e
topology: v6e:2x2x1
jax: 0.10.0
libtpu: 0.0.40
codegen_flags: <defaults>
</compile_context>

<pallas_src>
import functools

import jax
import jax.numpy as jnp
from jax.experimental import pallas as pl
from jax.experimental.pallas import tpu as pltpu


def _round_up(x, m):
    return ((x + m - 1) // m) * m


# ----------------------------------------------------------------------------
# Fused MLP kernel: all layers in one grid step, intermediates never leave VMEM
# ----------------------------------------------------------------------------

def _mlp_fused_kernel(x_ref, *refs, num_layers, sigmoid_output):
    """refs = (w0, b0, w1, b1, ..., w_{L-1}, b_{L-1}, out_ref). All f32."""
    out_ref = refs[-1]
    wb_refs = refs[:-1]

    h = x_ref[...]                                    # (TM, D_in), f32
    for i in range(num_layers):
        w = wb_refs[2 * i][...]                       # (K_i, N_i), f32
        b = wb_refs[2 * i + 1][...]                   # (1, N_i),  f32
        # f32 MXU matmul with f32 accumulation; bias add on the VPU.
        h = jnp.dot(h, w, preferred_element_type=jnp.float32) + b
        if i < num_layers - 1:
            h = jnp.maximum(h, 0.0)                   # ReLU
    if sigmoid_output:
        h = jax.nn.sigmoid(h)                         # EUP exp + reciprocal
    out_ref[...] = h.astype(out_ref.dtype)


def _choose_row_tile(m, max_rows_per_tile, min_rows_per_step=256,
                     target_steps=4):
    """Pick (tm, grid_n, mp): big tiles, minimal padding, >=2-4 steps when
    there is enough work for the v7x megacore to split."""
    # Steps forced by the per-step row cap (keeps VMEM tile sizes bounded).
    steps_cap = pl.cdiv(m, max_rows_per_tile)
    # Steps we *want* for megacore parallelism, but never make tiles tiny.
    steps_want = min(target_steps, max(1, m // min_rows_per_step))
    steps = max(steps_cap, steps_want)
    tm = _round_up(pl.cdiv(m, steps), 8)
    grid_n = pl.cdiv(m, tm)
    mp = grid_n * tm
    return tm, grid_n, mp


def mlp_forward(params, x, *, sigmoid_output=False, max_rows_per_tile=4096,
                out_dtype=jnp.float32):
    """Fused MLP forward (all layers in one pallas_call, f32 throughout).

    params: {"weights": [(K_i, N_i) f32 ...], "biases": [(N_i,) f32 ...]}
    x: (..., input_dim) f32. Returns (..., output_dim) in out_dtype.
    """
    weights = params["weights"]
    biases = params["biases"]
    num_layers = len(weights)
    assert num_layers >= 1

    orig_lead = x.shape[:-1]
    d_in = x.shape[-1]
    d_out = weights[-1].shape[-1]

    m = 1
    for s in orig_lead:
        m *= s
    x2 = x.reshape(m, d_in).astype(jnp.float32)

    tm, grid_n, mp = _choose_row_tile(m, max_rows_per_tile)
    if mp != m:
        x2 = jnp.pad(x2, ((0, mp - m), (0, 0)))
    grid = (grid_n,)

    # No wrapper-side casts: everything stays f32 (matches the reference and
    # avoids an extra HBM round trip for a cast the kernel does not need).
    w_list = [w.astype(jnp.float32) for w in weights]
    b_list = [b.reshape(1, -1).astype(jnp.float32) for b in biases]

    in_specs = [pl.BlockSpec((tm, d_in), lambda i: (i, 0))]
    operands = [x2]
    for w, b in zip(w_list, b_list):
        # Full-array blocks with constant index_map -> weights stay resident
        # in VMEM across row tiles (no re-DMA per grid step).
        in_specs.append(pl.BlockSpec(w.shape, lambda i: (0, 0)))
        in_specs.append(pl.BlockSpec(b.shape, lambda i: (0, 0)))
        operands.append(w)
        operands.append(b)

    kern = functools.partial(_mlp_fused_kernel, num_layers=num_layers,
                             sigmoid_output=sigmoid_output)

    # Row tiles are independent: "parallel" lets the v7x megacore shard the
    # grid; a single step is marked "arbitrary" (latency-bound regime).
    semantics = ("parallel",) if grid_n > 1 else ("arbitrary",)

    # Advisory cost estimate (helps XLA schedule/overlap the custom call).
    sum_kn = sum(int(w.shape[0]) * int(w.shape[1]) for w in w_list)
    flops = 2 * mp * sum_kn
    transcendentals = mp * d_out if sigmoid_output else 0
    bytes_accessed = int(x2.size) * 4 + int(mp * d_out) * jnp.dtype(out_dtype).itemsize
    bytes_accessed += sum(int(w.size) * 4 for w in w_list)
    bytes_accessed += sum(int(b.size) * 4 for b in b_list)
    cost = pl.CostEstimate(flops=flops, transcendentals=transcendentals,
                           bytes_accessed=bytes_accessed)

    # VMEM budget: weights (possibly double-buffered) + double-buffered x/out
    # tiles + generous activation slack.  Never go below the 32 MiB scoped
    # default; cap at 64 MiB so a large-hidden instantiation still fits v7x.
    w_bytes = sum(int(w.size) * 4 for w in w_list) + sum(int(b.size) * 4 for b in b_list)
    io_bytes = 2 * (tm * d_in * 4 + tm * d_out * 4)
    act_w = max([d_in] + [int(w.shape[1]) for w in w_list])
    est = 2 * w_bytes + io_bytes + 4 * tm * act_w * 4 + (4 << 20)
    vmem_limit = int(min(64 << 20, max(32 << 20, est)))

    out = pl.pallas_call(
        kern,
        out_shape=jax.ShapeDtypeStruct((mp, d_out), out_dtype),
        grid=grid,
        in_specs=in_specs,
        out_specs=pl.BlockSpec((tm, d_out), lambda i: (i, 0)),
        compiler_params=pltpu.CompilerParams(
            dimension_semantics=semantics,
            vmem_limit_bytes=vmem_limit),
        cost_estimate=cost,
    )(*operands)

    if mp != m:
        out = out[:m]
    return out.reshape(orig_lead + (d_out,))


# ----------------------------------------------------------------------------
# Pure-JAX reference (mirrors the PyTorch MLP.forward exactly, f32)
# ----------------------------------------------------------------------------

def mlp_reference(params, x, sigmoid_output=False):
    h = x
    L = len(params["weights"])
    for i, (w, b) in enumerate(zip(params["weights"], params["biases"])):
        h = h @ w + b
        if i < L - 1:
            h = jax.nn.relu(h)
    if sigmoid_output:
        h = jax.nn.sigmoid(h)
    return h


def init_mlp_params(key, input_dim, hidden_dim, output_dim, num_layers):
    """Shapes follow the nn.Linear chain: [input]+[hidden]*(L-1) -> [hidden]*(L-1)+[output]."""
    dims = [input_dim] + [hidden_dim] * (num_layers - 1) + [output_dim]
    keys = jax.random.split(key, 2 * num_layers)
    weights, biases = [], []
    for i in range(num_layers):
        fan_in = dims[i]
        w = jax.random.normal(keys[2 * i], (dims[i], dims[i + 1]),
                              jnp.float32) / jnp.sqrt(float(fan_in))
        b = jax.random.normal(keys[2 * i + 1], (dims[i + 1],),
                              jnp.float32) * 0.01
        weights.append(w)
        biases.append(b)
    return {"weights": weights, "biases": biases}


if __name__ == "__main__":
    key = jax.random.PRNGKey(0)
    pkey, xkey, xkey2 = jax.random.split(key, 3)

    # Small shapes consistent with the module's use in the mask decoder
    # (e.g. iou head / hypernetwork MLPs): 3 layers, hidden=64.
    B, T, D_IN, D_HID, D_OUT, L = 2, 8, 32, 64, 8, 3
    params = init_mlp_params(pkey, D_IN, D_HID, D_OUT, L)
    x = jax.random.normal(xkey, (B, T, D_IN), jnp.float32)

    # 1) Small, latency-bound case (single grid step).
    out = mlp_forward(params, x, sigmoid_output=False)
    jax.block_until_ready(out)
    assert out.shape == (B, T, D_OUT), out.shape
    ref = mlp_reference(params, x, sigmoid_output=False)
    err = float(jnp.max(jnp.abs(out - ref)))
    assert err < 1e-3, f"max abs err vs f32 reference: {err}"

    # 2) sigmoid_output=True path.
    out_s = mlp_forward(params, x, sigmoid_output=True)
    jax.block_until_ready(out_s)
    ref_s = mlp_reference(params, x, sigmoid_output=True)
    err_s = float(jnp.max(jnp.abs(out_s - ref_s)))
    assert out_s.shape == (B, T, D_OUT)
    assert err_s < 1e-3, f"max abs err (sigmoid) vs f32 reference: {err_s}"

    # 3) Larger row count: exercises the multi-step grid ("parallel" axis for
    #    the v7x megacore) and the minimal-padding tile selection.
    x_big = jax.random.normal(xkey2, (600, D_IN), jnp.float32)
    out_big = mlp_forward(params, x_big, sigmoid_output=False)
    jax.block_until_ready(out_big)
    ref_big = mlp_reference(params, x_big, sigmoid_output=False)
    err_big = float(jnp.max(jnp.abs(out_big - ref_big)))
    assert out_big.shape == (600, D_OUT)
    assert err_big < 1e-3, f"max abs err (600 rows) vs f32 reference: {err_big}"

    print("KERNEL_OK")
</pallas_src>

<mosaic_0001>
module attributes {stable_mosaic.version = 11 : i64} {
  func.func @_mlp_fused_kernel(%arg0: i32, %arg1: memref<16x32xf32, #tpu.memory_space<vmem>>, %arg2: memref<32x64xf32, #tpu.memory_space<vmem>>, %arg3: memref<1x64xf32, #tpu.memory_space<vmem>>, %arg4: memref<64x64xf32, #tpu.memory_space<vmem>>, %arg5: memref<1x64xf32, #tpu.memory_space<vmem>>, %arg6: memref<64x8xf32, #tpu.memory_space<vmem>>, %arg7: memref<1x8xf32, #tpu.memory_space<vmem>>, %arg8: memref<16x8xf32, #tpu.memory_space<vmem>>) attributes {dimension_semantics = [#tpu.dimension_semantics<arbitrary>], iteration_bounds = array<i64: 1>, scalar_prefetch = 0 : i64, scratch_operands = 0 : i64, tpu.core_type = #tpu.core_type<tc>, window_params = [{transform_indices = @transform_0, window_bounds = array<i64: 16, 32>}, {pipeline_mode = #tpu.pipeline_mode<synchronous>, transform_indices = @transform_1, window_bounds = array<i64: 32, 64>}, {pipeline_mode = #tpu.pipeline_mode<synchronous>, transform_indices = @transform_2, window_bounds = array<i64: 1, 64>}, {pipeline_mode = #tpu.pipeline_mode<synchronous>, transform_indices = @transform_3, window_bounds = array<i64: 64, 64>}, {pipeline_mode = #tpu.pipeline_mode<synchronous>, transform_indices = @transform_4, window_bounds = array<i64: 1, 64>}, {pipeline_mode = #tpu.pipeline_mode<synchronous>, transform_indices = @transform_5, window_bounds = array<i64: 64, 8>}, {pipeline_mode = #tpu.pipeline_mode<synchronous>, transform_indices = @transform_6, window_bounds = array<i64: 1, 8>}, {transform_indices = @transform_7, window_bounds = array<i64: 16, 8>}]} {
    %c0 = arith.constant 0 : index
    %c0_0 = arith.constant 0 : index
    %0 = vector.load %arg1[%c0, %c0_0] : memref<16x32xf32, #tpu.memory_space<vmem>>, vector<16x32xf32>
    %c0_1 = arith.constant 0 : index
    %c0_2 = arith.constant 0 : index
    %1 = vector.load %arg2[%c0_1, %c0_2] : memref<32x64xf32, #tpu.memory_space<vmem>>, vector<32x64xf32>
    %c0_3 = arith.constant 0 : index
    %c0_4 = arith.constant 0 : index
    %2 = vector.load %arg3[%c0_3, %c0_4] : memref<1x64xf32, #tpu.memory_space<vmem>>, vector<1x64xf32>
    %cst = arith.constant dense<0.000000e+00> : vector<16x64xf32>
    %3 = tpu.matmul %0, %1, %cst {dimension_numbers = #tpu.dot_dimension_numbers<[1], [0], [0], [1], [0, 0, 1, 1], [], []>} : vector<16x32xf32>, vector<32x64xf32>, vector<16x64xf32> -> vector<16x64xf32>
    %4 = vector.broadcast %2 : vector<1x64xf32> to vector<16x64xf32>
    %5 = arith.addf %3, %4 : vector<16x64xf32>
    %cst_5 = arith.constant 0.000000e+00 : f32
    %6 = vector.broadcast %cst_5 : f32 to vector<16x64xf32>
    %7 = arith.maximumf %5, %6 : vector<16x64xf32>
    %c0_6 = arith.constant 0 : index
    %c0_7 = arith.constant 0 : index
    %8 = vector.load %arg4[%c0_6, %c0_7] : memref<64x64xf32, #tpu.memory_space<vmem>>, vector<64x64xf32>
    %c0_8 = arith.constant 0 : index
    %c0_9 = arith.constant 0 : index
    %9 = vector.load %arg5[%c0_8, %c0_9] : memref<1x64xf32, #tpu.memory_space<vmem>>, vector<1x64xf32>
    %cst_10 = arith.constant dense<0.000000e+00> : vector<16x64xf32>
    %10 = tpu.matmul %7, %8, %cst_10 {dimension_numbers = #tpu.dot_dimension_numbers<[1], [0], [0], [1], [0, 0, 1, 1], [], []>} : vector<16x64xf32>, vector<64x64xf32>, vector<16x64xf32> -> vector<16x64xf32>
    %11 = vector.broadcast %9 : vector<1x64xf32> to vector<16x64xf32>
    %12 = arith.addf %10, %11 : vector<16x64xf32>
    %cst_11 = arith.constant 0.000000e+00 : f32
    %13 = vector.broadcast %cst_11 : f32 to vector<16x64xf32>
    %14 = arith.maximumf %12, %13 : vector<16x64xf32>
    %c0_12 = arith.constant 0 : index
    %c0_13 = arith.constant 0 : index
    %15 = vector.load %arg6[%c0_12, %c0_13] : memref<64x8xf32, #tpu.memory_space<vmem>>, vector<64x8xf32>
    %c0_14 = arith.constant 0 : index
    %c0_15 = arith.constant 0 : index
    %16 = vector.load %arg7[%c0_14, %c0_15] : memref<1x8xf32, #tpu.memory_space<vmem>>, vector<1x8xf32>
    %cst_16 = arith.constant dense<0.000000e+00> : vector<16x8xf32>
    %17 = tpu.matmul %14, %15, %cst_16 {dimension_numbers = #tpu.dot_dimension_numbers<[1], [0], [0], [1], [0, 0, 1, 1], [], []>} : vector<16x64xf32>, vector<64x8xf32>, vector<16x8xf32> -> vector<16x8xf32>
    %18 = vector.broadcast %16 : vector<1x8xf32> to vector<16x8xf32>
    %19 = arith.addf %17, %18 : vector<16x8xf32>
    %c0_17 = arith.constant 0 : index
    %c0_18 = arith.constant 0 : index
    %20 = vector.load %arg8[%c0_17, %c0_18] : memref<16x8xf32, #tpu.memory_space<vmem>>, vector<16x8xf32>
    tpu.vector_store %arg8[%c0_17, %c0_18], %19 {strides = array<i32>} : memref<16x8xf32, #tpu.memory_space<vmem>>, vector<16x8xf32>,
    return
  }
  func.func @transform_0(%arg0: i32) -> (i32, i32) {
    %c0_i32 = arith.constant 0 : i32
    %c0_i32_0 = arith.constant 0 : i32
    return %arg0, %c0_i32 : i32, i32
  }
  func.func @transform_1(%arg0: i32) -> (i32, i32) {
    %c0_i32 = arith.constant 0 : i32
    %c0_i32_0 = arith.constant 0 : i32
    %c0_i32_1 = arith.constant 0 : i32
    return %c0_i32, %c0_i32_0 : i32, i32
  }
  func.func @transform_2(%arg0: i32) -> (i32, i32) {
    %c0_i32 = arith.constant 0 : i32
    %c0_i32_0 = arith.constant 0 : i32
    %c0_i32_1 = arith.constant 0 : i32
    return %c0_i32, %c0_i32_0 : i32, i32
  }
  func.func @transform_3(%arg0: i32) -> (i32, i32) {
    %c0_i32 = arith.constant 0 : i32
    %c0_i32_0 = arith.constant 0 : i32
    %c0_i32_1 = arith.constant 0 : i32
    return %c0_i32, %c0_i32_0 : i32, i32
  }
  func.func @transform_4(%arg0: i32) -> (i32, i32) {
    %c0_i32 = arith.constant 0 : i32
    %c0_i32_0 = arith.constant 0 : i32
    %c0_i32_1 = arith.constant 0 : i32
    return %c0_i32, %c0_i32_0 : i32, i32
  }
  func.func @transform_5(%arg0: i32) -> (i32, i32) {
    %c0_i32 = arith.constant 0 : i32
    %c0_i32_0 = arith.constant 0 : i32
    %c0_i32_1 = arith.constant 0 : i32
    return %c0_i32, %c0_i32_0 : i32, i32
  }
  func.func @transform_6(%arg0: i32) -> (i32, i32) {
    %c0_i32 = arith.constant 0 : i32
    %c0_i32_0 = arith.constant 0 : i32
    %c0_i32_1 = arith.constant 0 : i32
    return %c0_i32, %c0_i32_0 : i32, i32
  }
  func.func @transform_7(%arg0: i32) -> (i32, i32) {
    %c0_i32 = arith.constant 0 : i32
    %c0_i32_0 = arith.constant 0 : i32
    return %arg0, %c0_i32 : i32, i32
  }
}

</mosaic_0001>

<llo_original>
// kernel: tpu_custom_call.1
$region0: #{tpu_custom_call.1}
  #allocation0 [shape = 'u32[]', space=smem, size = 0x4, offset = 0x4, fixed_abs, tag = 'smem constant byte address 0x4 - core index']
  #allocation1 [shape = 'u32[144,128]{1,0:T(1,128)}', space=vmem, size = 0x12000, scoped, tag = 'internal scratch']
  %s0 = inlined_call_operand.hbm [shape: f32[16,32], index: 0, kind: input, shape index: {}]
  %s1 = inlined_call_operand.hbm [shape: f32[32,64], index: 1, kind: input, shape index: {}]
  %s2 = inlined_call_operand.vmem [shape: f32[1,64], index: 2, kind: input, shape index: {}]
  %s3 = inlined_call_operand.vmem [shape: f32[64,64], index: 3, kind: input, shape index: {}]
  %s4 = inlined_call_operand.vmem [shape: f32[1,64], index: 4, kind: input, shape index: {}]
  %s5 = inlined_call_operand.vmem [shape: f32[64,8], index: 5, kind: input, shape index: {}]
  %s6 = inlined_call_operand.vmem [shape: f32[1,8], index: 6, kind: input, shape index: {}]
  %s7 = inlined_call_operand.vmem [shape: f32[16,8], index: 7, kind: output, shape index: {}]
  %s8 = sld [smem:[#allocation0]]
  $region46: #{tpu_custom_call.1} parent=0
    _
  %s10 = ssub.s32 1, %s8
  %s11 = scalar_select 0, %s10, %s8
  $region1: #{tpu_custom_call.1} parent=0
    #allocation2 [shape = 'u8[8192]{0}', space=vmem, size = 0x2000, scoped, tag = 'input window, operand 0, single buffered']
    #allocation3 [shape = 's32[1]{0}', space=sflag, size = 0x4, scoped, tag = 'scoped memory for tpu_custom_call.1']
    #allocation4 [shape = 'u8[16384]{0}', space=vmem, size = 0x4000, scoped, tag = 'input window, operand 1, single buffered']
    #allocation5 [shape = 's32[1]{0}', space=sflag, size = 0x4, scoped, tag = 'scoped memory for tpu_custom_call.1']
    %12 = vsyncpa [#allocation3], 0
    %13 = vsyncpa [#allocation5], 0
    // Predicated region
    $region2: #{tpu_custom_call.1} parent=1 // pred_check
      _
    $region3: #{tpu_custom_call.1} parent=1 // pred_check_branch
      %15 = sbr.rel (0) target = $region5
    $region4: #{tpu_custom_call.1} parent=1 // pred_region
      %s17 = ssub.s32 256, 256
      %18 = vsyncadd [#allocation3], %s17
      %s19 = sshll.u32 [#allocation2], 4
      %s20 = int_to_ptr.vmem [resolvable:$true] %s19
      %25 = dma.hbm_to_vmem [thread:$0]  %s0, 256, %s20, [#allocation3], 128, 128, 8
    $region5: #{tpu_custom_call.1} parent=1 // pred_fallthru
      _
    // Predicated region
    $region6: #{tpu_custom_call.1} parent=1 // pred_check
      _
    $region7: #{tpu_custom_call.1} parent=1 // pred_check_branch
      %27 = sbr.rel (0) target = $region9
    $region8: #{tpu_custom_call.1} parent=1 // pred_region
      %s29 = ssub.s32 512, 512
      %30 = vsyncadd [#allocation5], %s29
      %s31 = sshll.u32 [#allocation4], 4
      %s32 = int_to_ptr.vmem [resolvable:$true] %s31
      %37 = dma.hbm_to_vmem [thread:$0]  %s1, 512, %s32, [#allocation5], 128, 128, 8
    $region9: #{tpu_custom_call.1} parent=1 // pred_fallthru
      _
    // Predicated region
    $region10: #{tpu_custom_call.1} parent=1 // pred_check
      _
    $region11: #{tpu_custom_call.1} parent=1 // pred_check_branch
      %39 = sbr.rel (0) target = $region13
    $region12: #{tpu_custom_call.1} parent=1 // pred_region
      _
    $region13: #{tpu_custom_call.1} parent=1 // pred_fallthru
      _
    // Predicated region
    $region14: #{tpu_custom_call.1} parent=1 // pred_check
      _
    $region15: #{tpu_custom_call.1} parent=1 // pred_check_branch
      %41 = sbr.rel (0) target = $region17
    $region16: #{tpu_custom_call.1} parent=1 // pred_region
      _
    $region17: #{tpu_custom_call.1} parent=1 // pred_fallthru
      _
    // Predicated region
    $region18: #{tpu_custom_call.1} parent=1 // pred_check
      _
    $region19: #{tpu_custom_call.1} parent=1 // pred_check_branch
      %43 = sbr.rel (0) target = $region21
    $region20: #{tpu_custom_call.1} parent=1 // pred_region
      _
    $region21: #{tpu_custom_call.1} parent=1 // pred_fallthru
      _
    // Predicated region
    $region22: #{tpu_custom_call.1} parent=1 // pred_check
      _
    $region23: #{tpu_custom_call.1} parent=1 // pred_check_branch
      %45 = sbr.rel (0) target = $region25
    $region24: #{tpu_custom_call.1} parent=1 // pred_region
      _
    $region25: #{tpu_custom_call.1} parent=1 // pred_fallthru
      _
    // Predicated region
    $region26: #{tpu_custom_call.1} parent=1 // pred_check
      _
    $region27: #{tpu_custom_call.1} parent=1 // pred_check_branch
      %47 = sbr.rel (0) target = $region29
    $region28: #{tpu_custom_call.1} parent=1 // pred_region
      _
    $region29: #{tpu_custom_call.1} parent=1 // pred_fallthru
      _
    // Predicated region
    $region30: #{tpu_custom_call.1} parent=1 // pred_check
      _
    $region31: #{tpu_custom_call.1} parent=1 // pred_check_branch
      %49 = sbr.rel (0) target = $region33
    $region32: #{tpu_custom_call.1} parent=1 // pred_region
      %50 = dma.done [#allocation3], 256
    $region33: #{tpu_custom_call.1} parent=1 // pred_fallthru
      _
    // Predicated region
    $region34: #{tpu_custom_call.1} parent=1 // pred_check
      _
    $region35: #{tpu_custom_call.1} parent=1 // pred_check_branch
      %52 = sbr.rel (0) target = $region37
    $region36: #{tpu_custom_call.1} parent=1 // pred_region
      %53 = dma.done [#allocation5], 512
    $region37: #{tpu_custom_call.1} parent=1 // pred_fallthru
      _
    %v54 = vld [vmem:[#allocation2] sm:$0xff]
    %v55 = vld [vmem:[#allocation2 + $0x8] sm:$0xff]
    %v56 = vld [vmem:[#allocation4] sm:$0xff]
    %v57 = vld [vmem:[#allocation4 + $0x8] sm:$0xff]
    %v58 = vld [vmem:[#allocation4 + $0x10] sm:$0xff]
    %v59 = vld [vmem:[#allocation4 + $0x18] sm:$0xff]
    %v60 = vld [vmem:[%s2] sm:$0x1]
    %v62 = vlaneseq
    %v63 = vshrl.u32 %v62, 7
    %v64 = vsub.s32 0, %v63
    %v65 = vrot.slane %v60, %v64
    %vm67 = vcmask 261120
    %v69 = vsel %vm67, %v54, 0
    %v72 = vsel %vm67, %v55, 0
    %74 = vmatprep.subr.mxu0 0.0
    %75 = vmatpush1.msra.mxu0 0.0
    %76 = vmatprep.subr.mxu0 0.0
    %77 = vmatpush1.msra.mxu0 0.0
    %78 = vmatprep.subr.mxu0 0.0
    %79 = vmatpush1.msra.mxu0 0.0
    %80 = vmatprep.subr.mxu0 0.0
    %81 = vmatpush1.msra.mxu0 0.0
    %82 = vmatprep.subr.mxu0 0.0
    %83 = vmatpush1.msra.mxu0 0.0
    %84 = vmatprep.subr.mxu0 0.0
    %85 = vmatpush1.msra.mxu0 0.0
    %86 = vmatprep.subr.mxu0 0.0
    %87 = vmatpush1.msra.mxu0 0.0
    %88 = vmatprep.subr.mxu0 0.0
    %89 = vmatpush1.msra.mxu0 0.0
    %90 = vmatprep.subr.mxu0 0.0
    %91 = vmatpush1.msra.mxu0 0.0
    %92 = vmatprep.subr.mxu0 0.0
    %93 = vmatpush1.msra.mxu0 0.0
    %94 = vmatprep.subr.mxu0 0.0
    %95 = vmatpush1.msra.mxu0 0.0
    %96 = vmatprep.subr.mxu0 0.0
    %97 = vmatpush1.msra.mxu0 0.0
    %98 = vmatprep.subr.mxu0 0.0
    %99 = vmatpush1.msra.mxu0 %v59
    %100 = vmatprep.subr.mxu0 0.0
    %101 = vmatpush1.msra.mxu0 %v58
    %102 = vmatprep.subr.mxu0 0.0
    %103 = vmatpush1.msra.mxu0 %v57
    %104 = vmatprep.subr.mxu0 0.0
    %105 = vmatpush1.msra.mxu0 %v56
    %106 = vmatprep.subr.mxu0 0.0
    %107 = vmatpush2.msra.mxu0 0.0
    %108 = vmatprep.subr.mxu0 0.0
    %109 = vmatpush2.msra.mxu0 0.0
    %110 = vmatprep.subr.mxu0 0.0
    %111 = vmatpush2.msra.mxu0 0.0
    %112 = vmatprep.subr.mxu0 0.0
    %113 = vmatpush2.msra.mxu0 0.0
    %114 = vmatprep.subr.mxu0 0.0
    %115 = vmatpush2.msra.mxu0 0.0
    %116 = vmatprep.subr.mxu0 0.0
    %117 = vmatpush2.msra.mxu0 0.0
    %118 = vmatprep.subr.mxu0 0.0
    %119 = vmatpush2.msra.mxu0 0.0
    %120 = vmatprep.subr.mxu0 0.0
    %121 = vmatpush2.msra.mxu0 0.0
    %122 = vmatprep.subr.mxu0 0.0
    %123 = vmatpush2.msra.mxu0 0.0
    %124 = vmatprep.subr.mxu0 0.0
    %125 = vmatpush2.msra.mxu0 0.0
    %126 = vmatprep.subr.mxu0 0.0
    %127 = vmatpush2.msra.mxu0 0.0
    %128 = vmatprep.subr.mxu0 0.0
    %129 = vmatpush2.msra.mxu0 0.0
    %130 = vmatprep.subr.mxu0 0.0
    %131 = vmatpush2.msra.mxu0 0.0
    %132 = vmatprep.subr.mxu0 0.0
    %133 = vmatpush2.msra.mxu0 0.0
    %134 = vmatprep.subr.mxu0 0.0
    %135 = vmatpush2.msra.mxu0 0.0
    %136 = vmatprep.subr.mxu0 0.0
    %137 = vmatpush2.msra.mxu0 0.0
    %138 = vmatprep.mubr.f32.mxu0 0.0
    %139 = vmatmul.mubr.f32.gmra.mxu0 %v69
    %v140 = vpop.f32.mrf.mxu0
    %v141 = vadd.f32 %v65, %v140
    %v142 = vpop.f32.mrf.mxu0
    %143 = vmatprep.mubr.f32.mxu0 0.0
    %144 = vmatmul.mubr.f32.gmra.mxu0 %v72
    %v145 = vpop.f32.mrf.mxu0
    %v146 = vadd.f32 %v65, %v145
    %v147 = vpop.f32.mrf.mxu0
    %148 = vdwg.mxu0
    %v149 = vmax.f32 %v141, 0.0
    %v150 = vmax.f32 %v146, 0.0
    %v151 = vld [vmem:[%s3] sm:$0xff]
    %v152 = vld [vmem:[%s3 + $0x8] sm:$0xff]
    %v153 = vld [vmem:[%s3 + $0x10] sm:$0xff]
    %v154 = vld [vmem:[%s3 + $0x18] sm:$0xff]
    %v155 = vld [vmem:[%s3 + $0x20] sm:$0xff]
    %v156 = vld [vmem:[%s3 + $0x28] sm:$0xff]
    %v157 = vld [vmem:[%s3 + $0x30] sm:$0xff]
    %v158 = vld [vmem:[%s3 + $0x38] sm:$0xff]
    %v159 = vld [vmem:[%s4] sm:$0x1]
    %v161 = vlaneseq
    %v162 = vshrl.u32 %v161, 7
    %v163 = vsub.s32 0, %v162
    %v164 = vrot.slane %v159, %v163
    %vm166 = vcmask 523264
    %v168 = vsel %vm166, %v149, 0
    %v171 = vsel %vm166, %v150, 0
    %173 = vmatprep.subr.mxu0 0.0
    %174 = vmatpush1.msra.mxu0 0.0
    %175 = vmatprep.subr.mxu0 0.0
    %176 = vmatpush1.msra.mxu0 0.0
    %177 = vmatprep.subr.mxu0 0.0
    %178 = vmatpush1.msra.mxu0 0.0
    %179 = vmatprep.subr.mxu0 0.0
    %180 = vmatpush1.msra.mxu0 0.0
    %181 = vmatprep.subr.mxu0 0.0
    %182 = vmatpush1.msra.mxu0 0.0
    %183 = vmatprep.subr.mxu0 0.0
    %184 = vmatpush1.msra.mxu0 0.0
    %185 = vmatprep.subr.mxu0 0.0
    %186 = vmatpush1.msra.mxu0 0.0
    %187 = vmatprep.subr.mxu0 0.0
    %188 = vmatpush1.msra.mxu0 0.0
    %189 = vmatprep.subr.mxu0 0.0
    %190 = vmatpush1.msra.mxu0 %v158
    %191 = vmatprep.subr.mxu0 0.0
    %192 = vmatpush1.msra.mxu0 %v157
    %193 = vmatprep.subr.mxu0 0.0
    %194 = vmatpush1.msra.mxu0 %v156
    %195 = vmatprep.subr.mxu0 0.0
    %196 = vmatpush1.msra.mxu0 %v155
    %197 = vmatprep.subr.mxu0 0.0
    %198 = vmatpush1.msra.mxu0 %v154
    %199 = vmatprep.subr.mxu0 0.0
    %200 = vmatpush1.msra.mxu0 %v153
    %201 = vmatprep.subr.mxu0 0.0
    %202 = vmatpush1.msra.mxu0 %v152
    %203 = vmatprep.subr.mxu0 0.0
    %204 = vmatpush1.msra.mxu0 %v151
    %205 = vmatprep.subr.mxu0 0.0
    %206 = vmatpush2.msra.mxu0 0.0
    %207 = vmatprep.subr.mxu0 0.0
    %208 = vmatpush2.msra.mxu0 0.0
    %209 = vmatprep.subr.mxu0 0.0
    %210 = vmatpush2.msra.mxu0 0.0
    %211 = vmatprep.subr.mxu0 0.0
    %212 = vmatpush2.msra.mxu0 0.0
    %213 = vmatprep.subr.mxu0 0.0
    %214 = vmatpush2.msra.mxu0 0.0
    %215 = vmatprep.subr.mxu0 0.0
    %216 = vmatpush2.msra.mxu0 0.0
    %217 = vmatprep.subr.mxu0 0.0
    %218 = vmatpush2.msra.mxu0 0.0
    %219 = vmatprep.subr.mxu0 0.0
    %220 = vmatpush2.msra.mxu0 0.0
    %221 = vmatprep.subr.mxu0 0.0
    %222 = vmatpush2.msra.mxu0 0.0
    %223 = vmatprep.subr.mxu0 0.0
    %224 = vmatpush2.msra.mxu0 0.0
    %225 = vmatprep.subr.mxu0 0.0
    %226 = vmatpush2.msra.mxu0 0.0
    %227 = vmatprep.subr.mxu0 0.0
    %228 = vmatpush2.msra.mxu0 0.0
    %229 = vmatprep.subr.mxu0 0.0
    %230 = vmatpush2.msra.mxu0 0.0
    %231 = vmatprep.subr.mxu0 0.0
    %232 = vmatpush2.msra.mxu0 0.0
    %233 = vmatprep.subr.mxu0 0.0
    %234 = vmatpush2.msra.mxu0 0.0
    %235 = vmatprep.subr.mxu0 0.0
    %236 = vmatpush2.msra.mxu0 0.0
    %237 = vmatprep.mubr.f32.mxu0 0.0
    %238 = vmatmul.mubr.f32.gmra.mxu0 %v168
    %v239 = vpop.f32.mrf.mxu0
    %v240 = vadd.f32 %v164, %v239
    %v241 = vpop.f32.mrf.mxu0
    %242 = vmatprep.mubr.f32.mxu0 0.0
    %243 = vmatmul.mubr.f32.gmra.mxu0 %v171
    %v244 = vpop.f32.mrf.mxu0
    %v245 = vadd.f32 %v164, %v244
    %v246 = vpop.f32.mrf.mxu0
    %247 = vdwg.mxu0
    %v248 = vmax.f32 %v240, 0.0
    %v249 = vmax.f32 %v245, 0.0
    %v250 = vld [vmem:[%s5] sm:$0xff]
    %v251 = vld [vmem:[%s5 + $0x8] sm:$0xff]
    %v252 = vld [vmem:[%s5 + $0x10] sm:$0xff]
    %v253 = vld [vmem:[%s5 + $0x18] sm:$0xff]
    %v254 = vld [vmem:[%s5 + $0x20] sm:$0xff]
    %v255 = vld [vmem:[%s5 + $0x28] sm:$0xff]
    %v256 = vld [vmem:[%s5 + $0x30] sm:$0xff]
    %v257 = vld [vmem:[%s5 + $0x38] sm:$0xff]
    %v258 = vld [vmem:[%s6] sm:$0x1]
    %v260 = vlaneseq
    %v261 = vshrl.u32 %v260, 7
    %v262 = vsub.s32 0, %v261
    %v263 = vrot.slane %v258, %v262
    %v266 = vsel %vm166, %v248, 0
    %v269 = vsel %vm166, %v249, 0
    %271 = vmatprep.subr.mxu0 0.0
    %272 = vmatpush1.msra.mxu0 0.0
    %273 = vmatprep.subr.mxu0 0.0
    %274 = vmatpush1.msra.mxu0 0.0
    %275 = vmatprep.subr.mxu0 0.0
    %276 = vmatpush1.msra.mxu0 0.0
    %277 = vmatprep.subr.mxu0 0.0
    %278 = vmatpush1.msra.mxu0 0.0
    %279 = vmatprep.subr.mxu0 0.0
    %280 = vmatpush1.msra.mxu0 0.0
    %281 = vmatprep.subr.mxu0 0.0
    %282 = vmatpush1.msra.mxu0 0.0
    %283 = vmatprep.subr.mxu0 0.0
    %284 = vmatpush1.msra.mxu0 0.0
    %285 = vmatprep.subr.mxu0 0.0
    %286 = vmatpush1.msra.mxu0 0.0
    %287 = vmatprep.subr.mxu0 0.0
    %288 = vmatpush1.msra.mxu0 %v257
    %289 = vmatprep.subr.mxu0 0.0
    %290 = vmatpush1.msra.mxu0 %v256
    %291 = vmatprep.subr.mxu0 0.0
    %292 = vmatpush1.msra.mxu0 %v255
    %293 = vmatprep.subr.mxu0 0.0
    %294 = vmatpush1.msra.mxu0 %v254
    %295 = vmatprep.subr.mxu0 0.0
    %296 = vmatpush1.msra.mxu0 %v253
    %297 = vmatprep.subr.mxu0 0.0
    %298 = vmatpush1.msra.mxu0 %v252
    %299 = vmatprep.subr.mxu0 0.0
    %300 = vmatpush1.msra.mxu0 %v251
    %301 = vmatprep.subr.mxu0 0.0
    %302 = vmatpush1.msra.mxu0 %v250
    %303 = vmatprep.subr.mxu0 0.0
    %304 = vmatpush2.msra.mxu0 0.0
    %305 = vmatprep.subr.mxu0 0.0
    %306 = vmatpush2.msra.mxu0 0.0
    %307 = vmatprep.subr.mxu0 0.0
    %308 = vmatpush2.msra.mxu0 0.0
    %309 = vmatprep.subr.mxu0 0.0
    %310 = vmatpush2.msra.mxu0 0.0
    %311 = vmatprep.subr.mxu0 0.0
    %312 = vmatpush2.msra.mxu0 0.0
    %313 = vmatprep.subr.mxu0 0.0
    %314 = vmatpush2.msra.mxu0 0.0
    %315 = vmatprep.subr.mxu0 0.0
    %316 = vmatpush2.msra.mxu0 0.0
    %317 = vmatprep.subr.mxu0 0.0
    %318 = vmatpush2.msra.mxu0 0.0
    %319 = vmatprep.subr.mxu0 0.0
    %320 = vmatpush2.msra.mxu0 0.0
    %321 = vmatprep.subr.mxu0 0.0
    %322 = vmatpush2.msra.mxu0 0.0
    %323 = vmatprep.subr.mxu0 0.0
    %324 = vmatpush2.msra.mxu0 0.0
    %325 = vmatprep.subr.mxu0 0.0
    %326 = vmatpush2.msra.mxu0 0.0
    %327 = vmatprep.subr.mxu0 0.0
    %328 = vmatpush2.msra.mxu0 0.0
    %329 = vmatprep.subr.mxu0 0.0
    %330 = vmatpush2.msra.mxu0 0.0
    %331 = vmatprep.subr.mxu0 0.0
    %332 = vmatpush2.msra.mxu0 0.0
    %333 = vmatprep.subr.mxu0 0.0
    %334 = vmatpush2.msra.mxu0 0.0
    %335 = vmatprep.mubr.f32.mxu0 0.0
    %336 = vmatmul.mubr.f32.gmra.mxu0 %v266
    %v337 = vpop.f32.mrf.mxu0
    %v338 = vadd.f32 %v263, %v337
    %v339 = vpop.f32.mrf.mxu0
    %340 = vmatprep.mubr.f32.mxu0 0.0
    %341 = vmatmul.mubr.f32.gmra.mxu0 %v269
    %v342 = vpop.f32.mrf.mxu0
    %v343 = vadd.f32 %v263, %v342
    %v344 = vpop.f32.mrf.mxu0
    %345 = vdwg.mxu0
    %vm346 = vcmask 64512
    %347 = vst.msk [vmem:[%s7] sm:$0xff] %vm346, %v338
    %348 = vst.msk [vmem:[%s7 + $0x8] sm:$0xff] %vm346, %v343
    // Predicated region
    $region38: #{tpu_custom_call.1} parent=1 // pred_check
      _
    $region39: #{tpu_custom_call.1} parent=1 // pred_check_branch
      %350 = sbr.rel (0) target = $region41
    $region40: #{tpu_custom_call.1} parent=1 // pred_region
      _
    $region41: #{tpu_custom_call.1} parent=1 // pred_fallthru
      _
    // Predicated region
    $region42: #{tpu_custom_call.1} parent=1 // pred_check
      _
    $region43: #{tpu_custom_call.1} parent=1 // pred_check_branch
      %352 = sbr.rel (0) target = $region45
    $region44: #{tpu_custom_call.1} parent=1 // pred_region
      _
    $region45: #{tpu_custom_call.1} parent=1 // pred_fallthru
      _
    %353 = vsyncpa [#allocation3], 1
    %354 = vsyncpa [#allocation5], 1

</llo_original>
